<compile_context>
chip_gen: v6e
topology: v6e:2x2x1
jax: 0.10.0
libtpu: 0.0.40
codegen_flags: <defaults>
</compile_context>

<pallas_src>
import functools

import jax
import jax.numpy as jnp
from jax.experimental import pallas as pl
from jax.experimental.pallas import tpu as pltpu


def _round_up(x, m):
    return ((x + m - 1) // m) * m


def _fusion_kernel(num_branches, *refs):
    # refs = (ctx, w1, b1, w2, b2, w3, b3, scores_0..scores_{nb-1}, out)
    ctx_ref = refs[0]
    w1_ref, b1_ref, w2_ref, b2_ref, w3_ref, b3_ref = refs[1:7]
    score_refs = refs[7:7 + num_branches]
    out_ref = refs[7 + num_branches]

    # MATT MLP in native bf16 MXU, f32 accumulators (dropout = identity, eval).
    ctx = ctx_ref[...]                                            # (TM, in_size) bf16
    z = jnp.dot(ctx, w1_ref[...], preferred_element_type=jnp.float32)
    z = jnp.maximum(z + b1_ref[...], 0.0).astype(jnp.bfloat16)
    z = jnp.dot(z, w2_ref[...], preferred_element_type=jnp.float32)
    z = jnp.maximum(z + b2_ref[...], 0.0).astype(jnp.bfloat16)
    logits = jnp.dot(z, w3_ref[...], preferred_element_type=jnp.float32)
    logits = logits + b3_ref[...]                                 # (TM, nb) f32

    # softmax over the branch axis.
    m = jnp.max(logits, axis=1, keepdims=True)
    e = jnp.exp(logits - m)
    a = e * pl.reciprocal(jnp.sum(e, axis=1, keepdims=True), approx=True)
    a16 = a.astype(jnp.bfloat16)                                  # (TM, nb)

    # Weighted sum of per-branch scores: bf16 mul, f32 accumulate, bf16 store.
    acc = (score_refs[0][...] * a16[:, 0:1]).astype(jnp.float32)
    for i in range(1, num_branches):
        acc = acc + (score_refs[i][...] * a16[:, i:i + 1]).astype(jnp.float32)
    out_ref[...] = acc.astype(out_ref.dtype)


def rulstm_fusion_pallas(context, matt_weights, scores_list, *,
                         tile_rows=512, class_tile=1280):
    """context: (N, in_size), scores_list: nb arrays of (N, C) -> (N, C) bf16."""
    (w1, b1), (w2, b2), (w3, b3) = matt_weights
    nb = len(scores_list)
    N, C = scores_list[0].shape
    in_size = context.shape[-1]

    # Cheap, one-time casts (no-ops if the glue already produced bf16).
    ctx = context.astype(jnp.bfloat16)
    scores_list = [s.astype(jnp.bfloat16) for s in scores_list]
    w1b, w2b, w3b = (w.astype(jnp.bfloat16) for w in (w1, w2, w3))
    b1f, b2f, b3f = (b.astype(jnp.float32).reshape(1, -1) for b in (b1, b2, b3))

    # Row tiling: no padding; ragged last block handled by Pallas edge masking.
    TM = min(tile_rows, _round_up(N, 8))
    grid_r = pl.cdiv(N, TM)
    # Class tiling: TN is either the full class dim or a multiple of 128.
    if C <= class_tile:
        TN, grid_c = C, 1
    else:
        TN = _round_up(min(class_tile, C), 128)
        grid_c = pl.cdiv(C, TN)

    kernel = functools.partial(_fusion_kernel, nb)
    score_specs = [pl.BlockSpec((TM, TN), lambda i, j: (i, j)) for _ in range(nb)]

    out = pl.pallas_call(
        kernel,
        out_shape=jax.ShapeDtypeStruct((N, C), jnp.bfloat16),
        grid=(grid_r, grid_c),
        in_specs=[
            pl.BlockSpec((TM, in_size), lambda i, j: (i, 0)),   # ctx tile (resident over j)
            pl.BlockSpec(w1b.shape, lambda i, j: (0, 0)),       # VMEM-resident MATT weights
            pl.BlockSpec(b1f.shape, lambda i, j: (0, 0)),
            pl.BlockSpec(w2b.shape, lambda i, j: (0, 0)),
            pl.BlockSpec(b2f.shape, lambda i, j: (0, 0)),
            pl.BlockSpec(w3b.shape, lambda i, j: (0, 0)),
            pl.BlockSpec(b3f.shape, lambda i, j: (0, 0)),
            *score_specs,                                        # per-branch score tiles
        ],
        out_specs=pl.BlockSpec((TM, TN), lambda i, j: (i, j)),
        compiler_params=pltpu.CompilerParams(
            dimension_semantics=("parallel", "parallel"),
            vmem_limit_bytes=40 * 1024 * 1024,
        ),
    )(ctx, w1b, b1f, w2b, b2f, w3b, b3f, *scores_list)
    return out


def rulstm_fusion_forward(inputs, branch_params, matt_weights):
    """Plain-JAX glue reproducing RULSTMFusion.forward (eval mode).

    inputs: list of per-branch inputs, each (B, S, Din)
    branch_params: list of (Ws, bs, Wc) linear-stub branch parameters
    matt_weights: ((w1,b1),(w2,b2),(w3,b3)) for the MATT MLP
    """
    scores, contexts = [], []
    for x, (Ws, bs, Wc) in zip(inputs, branch_params):
        # Branches emit bf16 directly -> no extra HBM pass before the kernel.
        s = (jnp.einsum("bsd,dc->bsc", x, Ws) + bs).astype(jnp.bfloat16)
        c = jnp.tanh(jnp.einsum("bsd,dh->bsh", x, Wc)).astype(jnp.bfloat16)
        scores.append(s)
        contexts.append(c)

    context = jnp.concatenate(contexts, axis=2)              # (B, S, 2*nb*hidden)
    B, S, in_size = context.shape
    context_flat = context.reshape(-1, in_size)              # (N, in_size)

    C = scores[0].shape[-1]
    scores_flat = [s.reshape(-1, C) for s in scores]          # views, no copy

    out_flat = rulstm_fusion_pallas(context_flat, matt_weights, scores_flat)
    return out_flat.reshape(B, S, C)                          # (B, S, C) bf16


def reference_forward(inputs, branch_params, matt_weights):
    """Pure-JAX f32 reference (mirrors the PyTorch forward, eval-mode dropout)."""
    scores, contexts = [], []
    for x, (Ws, bs, Wc) in zip(inputs, branch_params):
        scores.append(jnp.einsum("bsd,dc->bsc", x, Ws) + bs)
        contexts.append(jnp.tanh(jnp.einsum("bsd,dh->bsh", x, Wc)))
    context = jnp.concatenate(contexts, axis=2)
    ctx = context.reshape(-1, context.shape[-1])
    (w1, b1), (w2, b2), (w3, b3) = matt_weights
    z = jax.nn.relu(ctx @ w1 + b1)
    z = jax.nn.relu(z @ w2 + b2)
    a = jax.nn.softmax(z @ w3 + b3, axis=1)
    sc = jnp.zeros_like(scores[0])
    for i in range(len(scores)):
        s = (scores[i].reshape(-1, scores[i].shape[-1]) * a[:, i][:, None]
             ).reshape(sc.shape)
        sc = sc + s
    return sc


if __name__ == "__main__":
    key = jax.random.PRNGKey(0)

    # Small shapes consistent with the module.
    num_branches = 3
    hidden = 32
    B, S = 2, 4
    Din = 24             # per-branch input feature dim (branch stub)
    num_classes = 16

    in_size = 2 * num_branches * hidden          # 192
    h1 = in_size // 4                             # 48
    h2 = in_size // 8                             # 24

    keys = iter(jax.random.split(key, 32))
    nxt = lambda: next(keys)

    # Per-branch inputs and deterministic branch (linear stub) params.
    inputs = [jax.random.normal(nxt(), (B, S, Din), jnp.float32) * 0.5
              for _ in range(num_branches)]
    branch_params = []
    for _ in range(num_branches):
        Ws = jax.random.normal(nxt(), (Din, num_classes), jnp.float32) * 0.1
        bs = jax.random.normal(nxt(), (num_classes,), jnp.float32) * 0.1
        Wc = jax.random.normal(nxt(), (Din, 2 * hidden), jnp.float32) * 0.1
        branch_params.append((Ws, bs, Wc))

    # MATT MLP params: Linear(in, in/4) -> Linear(in/4, in/8) -> Linear(in/8, nb)
    w1 = jax.random.normal(nxt(), (in_size, h1), jnp.float32) * 0.05
    b1 = jax.random.normal(nxt(), (1, h1), jnp.float32) * 0.05
    w2 = jax.random.normal(nxt(), (h1, h2), jnp.float32) * 0.05
    b2 = jax.random.normal(nxt(), (1, h2), jnp.float32) * 0.05
    w3 = jax.random.normal(nxt(), (h2, num_branches), jnp.float32) * 0.05
    b3 = jax.random.normal(nxt(), (1, num_branches), jnp.float32) * 0.05
    matt_weights = ((w1, b1), (w2, b2), (w3, b3))

    out = rulstm_fusion_forward(inputs, branch_params, matt_weights)
    out = jax.block_until_ready(out)

    ref = reference_forward(inputs, branch_params, matt_weights)
    assert out.shape == (B, S, num_classes)
    # bf16 streaming + bf16 output + approx reciprocal -> bf16-level tolerance.
    assert jnp.allclose(out.astype(jnp.float32), ref, atol=2e-2, rtol=2e-2), \
        "mismatch vs reference"

    print("KERNEL_OK")
</pallas_src>

<mosaic_0001>
module attributes {stable_mosaic.version = 11 : i64} {
  func.func @_fusion_kernel(%arg0: i32, %arg1: i32, %arg2: memref<8x192xbf16, #tpu.memory_space<vmem>>, %arg3: memref<192x48xbf16, #tpu.memory_space<vmem>>, %arg4: memref<1x48xf32, #tpu.memory_space<vmem>>, %arg5: memref<48x24xbf16, #tpu.memory_space<vmem>>, %arg6: memref<1x24xf32, #tpu.memory_space<vmem>>, %arg7: memref<24x3xbf16, #tpu.memory_space<vmem>>, %arg8: memref<1x3xf32, #tpu.memory_space<vmem>>, %arg9: memref<8x16xbf16, #tpu.memory_space<vmem>>, %arg10: memref<8x16xbf16, #tpu.memory_space<vmem>>, %arg11: memref<8x16xbf16, #tpu.memory_space<vmem>>, %arg12: memref<8x16xbf16, #tpu.memory_space<vmem>>) attributes {dimension_semantics = [#tpu.dimension_semantics<parallel>, #tpu.dimension_semantics<parallel>], iteration_bounds = array<i64: 1, 1>, scalar_prefetch = 0 : i64, scratch_operands = 0 : i64, tpu.core_type = #tpu.core_type<tc>, window_params = [{transform_indices = @transform_0, window_bounds = array<i64: 8, 192>}, {pipeline_mode = #tpu.pipeline_mode<synchronous>, transform_indices = @transform_1, window_bounds = array<i64: 192, 48>}, {pipeline_mode = #tpu.pipeline_mode<synchronous>, transform_indices = @transform_2, window_bounds = array<i64: 1, 48>}, {pipeline_mode = #tpu.pipeline_mode<synchronous>, transform_indices = @transform_3, window_bounds = array<i64: 48, 24>}, {pipeline_mode = #tpu.pipeline_mode<synchronous>, transform_indices = @transform_4, window_bounds = array<i64: 1, 24>}, {pipeline_mode = #tpu.pipeline_mode<synchronous>, transform_indices = @transform_5, window_bounds = array<i64: 24, 3>}, {pipeline_mode = #tpu.pipeline_mode<synchronous>, transform_indices = @transform_6, window_bounds = array<i64: 1, 3>}, {transform_indices = @transform_7, window_bounds = array<i64: 8, 16>}, {transform_indices = @transform_8, window_bounds = array<i64: 8, 16>}, {transform_indices = @transform_9, window_bounds = array<i64: 8, 16>}, {transform_indices = @transform_10, window_bounds = array<i64: 8, 16>}]} {
    %c0 = arith.constant 0 : index
    %c0_0 = arith.constant 0 : index
    %0 = vector.load %arg2[%c0, %c0_0] : memref<8x192xbf16, #tpu.memory_space<vmem>>, vector<8x192xbf16>
    %c0_1 = arith.constant 0 : index
    %c0_2 = arith.constant 0 : index
    %1 = vector.load %arg3[%c0_1, %c0_2] : memref<192x48xbf16, #tpu.memory_space<vmem>>, vector<192x48xbf16>
    %cst = arith.constant dense<0.000000e+00> : vector<8x48xf32>
    %2 = tpu.matmul %0, %1, %cst {dimension_numbers = #tpu.dot_dimension_numbers<[1], [0], [0], [1], [0, 0, 1, 1], [], []>} : vector<8x192xbf16>, vector<192x48xbf16>, vector<8x48xf32> -> vector<8x48xf32>
    %c0_3 = arith.constant 0 : index
    %c0_4 = arith.constant 0 : index
    %3 = vector.load %arg4[%c0_3, %c0_4] : memref<1x48xf32, #tpu.memory_space<vmem>>, vector<1x48xf32>
    %4 = vector.broadcast %3 : vector<1x48xf32> to vector<8x48xf32>
    %5 = arith.addf %2, %4 : vector<8x48xf32>
    %cst_5 = arith.constant 0.000000e+00 : f32
    %6 = vector.broadcast %cst_5 : f32 to vector<8x48xf32>
    %7 = arith.maximumf %5, %6 : vector<8x48xf32>
    %8 = arith.truncf %7 : vector<8x48xf32> to vector<8x48xbf16>
    %c0_6 = arith.constant 0 : index
    %c0_7 = arith.constant 0 : index
    %9 = vector.load %arg5[%c0_6, %c0_7] : memref<48x24xbf16, #tpu.memory_space<vmem>>, vector<48x24xbf16>
    %cst_8 = arith.constant dense<0.000000e+00> : vector<8x24xf32>
    %10 = tpu.matmul %8, %9, %cst_8 {dimension_numbers = #tpu.dot_dimension_numbers<[1], [0], [0], [1], [0, 0, 1, 1], [], []>} : vector<8x48xbf16>, vector<48x24xbf16>, vector<8x24xf32> -> vector<8x24xf32>
    %c0_9 = arith.constant 0 : index
    %c0_10 = arith.constant 0 : index
    %11 = vector.load %arg6[%c0_9, %c0_10] : memref<1x24xf32, #tpu.memory_space<vmem>>, vector<1x24xf32>
    %12 = vector.broadcast %11 : vector<1x24xf32> to vector<8x24xf32>
    %13 = arith.addf %10, %12 : vector<8x24xf32>
    %cst_11 = arith.constant 0.000000e+00 : f32
    %14 = vector.broadcast %cst_11 : f32 to vector<8x24xf32>
    %15 = arith.maximumf %13, %14 : vector<8x24xf32>
    %16 = arith.truncf %15 : vector<8x24xf32> to vector<8x24xbf16>
    %c0_12 = arith.constant 0 : index
    %c0_13 = arith.constant 0 : index
    %17 = vector.load %arg7[%c0_12, %c0_13] : memref<24x3xbf16, #tpu.memory_space<vmem>>, vector<24x3xbf16>
    %cst_14 = arith.constant dense<0.000000e+00> : vector<8x3xf32>
    %18 = tpu.matmul %16, %17, %cst_14 {dimension_numbers = #tpu.dot_dimension_numbers<[1], [0], [0], [1], [0, 0, 1, 1], [], []>} : vector<8x24xbf16>, vector<24x3xbf16>, vector<8x3xf32> -> vector<8x3xf32>
    %c0_15 = arith.constant 0 : index
    %c0_16 = arith.constant 0 : index
    %19 = vector.load %arg8[%c0_15, %c0_16] : memref<1x3xf32, #tpu.memory_space<vmem>>, vector<1x3xf32>
    %20 = vector.broadcast %19 : vector<1x3xf32> to vector<8x3xf32>
    %21 = arith.addf %18, %20 : vector<8x3xf32>
    %cst_17 = arith.constant dense<0xFF800000> : vector<8xf32>
    %22 = vector.multi_reduction <maximumf>, %21, %cst_17 [1] : vector<8x3xf32> to vector<8xf32>
    %23 = vector.shape_cast %22 : vector<8xf32> to vector<8x1xf32>
    %24 = vector.broadcast %23 : vector<8x1xf32> to vector<8x3xf32>
    %25 = arith.subf %21, %24 : vector<8x3xf32>
    %26 = math.exp %25 : vector<8x3xf32>
    %cst_18 = arith.constant dense<0.000000e+00> : vector<8xf32>
    %27 = vector.multi_reduction <add>, %26, %cst_18 [1] : vector<8x3xf32> to vector<8xf32>
    %28 = vector.shape_cast %27 : vector<8xf32> to vector<8x1xf32>
    %29 = tpu.reciprocal %28 {approx = true} : vector<8x1xf32> -> vector<8x1xf32>
    %30 = vector.broadcast %29 : vector<8x1xf32> to vector<8x3xf32>
    %31 = arith.mulf %26, %30 : vector<8x3xf32>
    %32 = arith.truncf %31 : vector<8x3xf32> to vector<8x3xbf16>
    %c0_19 = arith.constant 0 : index
    %c0_20 = arith.constant 0 : index
    %33 = vector.load %arg9[%c0_19, %c0_20] : memref<8x16xbf16, #tpu.memory_space<vmem>>, vector<8x16xbf16>
    %34 = vector.extract_strided_slice %32 {offsets = [0, 0], sizes = [8, 1], strides = [1, 1]} : vector<8x3xbf16> to vector<8x1xbf16>
    %35 = vector.broadcast %34 : vector<8x1xbf16> to vector<8x16xbf16>
    %36 = arith.mulf %33, %35 : vector<8x16xbf16>
    %37 = arith.extf %36 : vector<8x16xbf16> to vector<8x16xf32>
    %c0_21 = arith.constant 0 : index
    %c0_22 = arith.constant 0 : index
    %38 = vector.load %arg10[%c0_21, %c0_22] : memref<8x16xbf16, #tpu.memory_space<vmem>>, vector<8x16xbf16>
    %39 = vector.extract_strided_slice %32 {offsets = [0, 1], sizes = [8, 1], strides = [1, 1]} : vector<8x3xbf16> to vector<8x1xbf16>
    %40 = vector.broadcast %39 : vector<8x1xbf16> to vector<8x16xbf16>
    %41 = arith.mulf %38, %40 : vector<8x16xbf16>
    %42 = arith.extf %41 : vector<8x16xbf16> to vector<8x16xf32>
    %43 = arith.addf %37, %42 : vector<8x16xf32>
    %c0_23 = arith.constant 0 : index
    %c0_24 = arith.constant 0 : index
    %44 = vector.load %arg11[%c0_23, %c0_24] : memref<8x16xbf16, #tpu.memory_space<vmem>>, vector<8x16xbf16>
    %45 = vector.extract_strided_slice %32 {offsets = [0, 2], sizes = [8, 1], strides = [1, 1]} : vector<8x3xbf16> to vector<8x1xbf16>
    %46 = vector.broadcast %45 : vector<8x1xbf16> to vector<8x16xbf16>
    %47 = arith.mulf %44, %46 : vector<8x16xbf16>
    %48 = arith.extf %47 : vector<8x16xbf16> to vector<8x16xf32>
    %49 = arith.addf %43, %48 : vector<8x16xf32>
    %50 = arith.truncf %49 : vector<8x16xf32> to vector<8x16xbf16>
    %c0_25 = arith.constant 0 : index
    %c0_26 = arith.constant 0 : index
    %51 = vector.load %arg12[%c0_25, %c0_26] : memref<8x16xbf16, #tpu.memory_space<vmem>>, vector<8x16xbf16>
    tpu.vector_store %arg12[%c0_25, %c0_26], %50 {strides = array<i32>} : memref<8x16xbf16, #tpu.memory_space<vmem>>, vector<8x16xbf16>,
    return
  }
  func.func @transform_0(%arg0: i32, %arg1: i32) -> (i32, i32) {
    %c0_i32 = arith.constant 0 : i32
    %c0_i32_0 = arith.constant 0 : i32
    return %arg0, %c0_i32 : i32, i32
  }
  func.func @transform_1(%arg0: i32, %arg1: i32) -> (i32, i32) {
    %c0_i32 = arith.constant 0 : i32
    %c0_i32_0 = arith.constant 0 : i32
    %c0_i32_1 = arith.constant 0 : i32
    return %c0_i32, %c0_i32_0 : i32, i32
  }
  func.func @transform_2(%arg0: i32, %arg1: i32) -> (i32, i32) {
    %c0_i32 = arith.constant 0 : i32
    %c0_i32_0 = arith.constant 0 : i32
    %c0_i32_1 = arith.constant 0 : i32
    return %c0_i32, %c0_i32_0 : i32, i32
  }
  func.func @transform_3(%arg0: i32, %arg1: i32) -> (i32, i32) {
    %c0_i32 = arith.constant 0 : i32
    %c0_i32_0 = arith.constant 0 : i32
    %c0_i32_1 = arith.constant 0 : i32
    return %c0_i32, %c0_i32_0 : i32, i32
  }
  func.func @transform_4(%arg0: i32, %arg1: i32) -> (i32, i32) {
    %c0_i32 = arith.constant 0 : i32
    %c0_i32_0 = arith.constant 0 : i32
    %c0_i32_1 = arith.constant 0 : i32
    return %c0_i32, %c0_i32_0 : i32, i32
  }
  func.func @transform_5(%arg0: i32, %arg1: i32) -> (i32, i32) {
    %c0_i32 = arith.constant 0 : i32
    %c0_i32_0 = arith.constant 0 : i32
    %c0_i32_1 = arith.constant 0 : i32
    return %c0_i32, %c0_i32_0 : i32, i32
  }
  func.func @transform_6(%arg0: i32, %arg1: i32) -> (i32, i32) {
    %c0_i32 = arith.constant 0 : i32
    %c0_i32_0 = arith.constant 0 : i32
    %c0_i32_1 = arith.constant 0 : i32
    return %c0_i32, %c0_i32_0 : i32, i32
  }
  func.func @transform_7(%arg0: i32, %arg1: i32) -> (i32, i32) {
    %c0_i32 = arith.constant 0 : i32
    return %arg0, %arg1 : i32, i32
  }
  func.func @transform_8(%arg0: i32, %arg1: i32) -> (i32, i32) {
    %c0_i32 = arith.constant 0 : i32
    return %arg0, %arg1 : i32, i32
  }
  func.func @transform_9(%arg0: i32, %arg1: i32) -> (i32, i32) {
    %c0_i32 = arith.constant 0 : i32
    return %arg0, %arg1 : i32, i32
  }
  func.func @transform_10(%arg0: i32, %arg1: i32) -> (i32, i32) {
    %c0_i32 = arith.constant 0 : i32
    return %arg0, %arg1 : i32, i32
  }
}

</mosaic_0001>

<llo_original>
// kernel: tpu_custom_call.1
$region0: #{tpu_custom_call.1}
  #allocation0 [shape = 'u32[]', space=smem, size = 0x4, offset = 0x4, fixed_abs, tag = 'smem constant byte address 0x4 - core index']
  #allocation1 [shape = 'u32[144,128]{1,0:T(1,128)}', space=vmem, size = 0x12000, scoped, tag = 'internal scratch']
  %s0 = inlined_call_operand.vmem [shape: bf16[8,192], index: 0, kind: input, shape index: {}]
  %s1 = inlined_call_operand.vmem [shape: bf16[192,48], index: 1, kind: input, shape index: {}]
  %s2 = inlined_call_operand.vmem [shape: f32[1,48], index: 2, kind: input, shape index: {}]
  %s3 = inlined_call_operand.vmem [shape: bf16[48,24], index: 3, kind: input, shape index: {}]
  %s4 = inlined_call_operand.vmem [shape: f32[1,24], index: 4, kind: input, shape index: {}]
  %s5 = inlined_call_operand.vmem [shape: bf16[24,3], index: 5, kind: input, shape index: {}]
  %s6 = inlined_call_operand.vmem [shape: f32[1,3], index: 6, kind: input, shape index: {}]
  %s7 = inlined_call_operand.vmem [shape: bf16[8,16], index: 7, kind: input, shape index: {}]
  %s8 = inlined_call_operand.vmem [shape: bf16[8,16], index: 8, kind: input, shape index: {}]
  %s9 = inlined_call_operand.vmem [shape: bf16[8,16], index: 9, kind: input, shape index: {}]
  %s10 = inlined_call_operand.hbm [shape: bf16[8,16], index: 10, kind: output, shape index: {}]
  %s11 = sld [smem:[#allocation0]]
  $region50: #{tpu_custom_call.1} parent=0
    _
  %s13 = ssub.s32 1, %s11
  %s14 = scalar_select 0, %s13, %s11
  $region1: #{tpu_custom_call.1} parent=0
    #allocation2 [shape = 'u8[2048]{0}', space=vmem, size = 0x800, scoped, tag = 'output window, operand 0, single buffered']
    #allocation3 [shape = 's32[1]{0}', space=sflag, size = 0x4, scoped, tag = 'scoped memory for tpu_custom_call.1']
    %15 = vsyncpa [#allocation3], 0
    // Predicated region
    $region2: #{tpu_custom_call.1} parent=1 // pred_check
      _
    $region3: #{tpu_custom_call.1} parent=1 // pred_check_branch
      %17 = sbr.rel (0) target = $region5
    $region4: #{tpu_custom_call.1} parent=1 // pred_region
      _
    $region5: #{tpu_custom_call.1} parent=1 // pred_fallthru
      _
    // Predicated region
    $region6: #{tpu_custom_call.1} parent=1 // pred_check
      _
    $region7: #{tpu_custom_call.1} parent=1 // pred_check_branch
      %19 = sbr.rel (0) target = $region9
    $region8: #{tpu_custom_call.1} parent=1 // pred_region
      _
    $region9: #{tpu_custom_call.1} parent=1 // pred_fallthru
      _
    // Predicated region
    $region10: #{tpu_custom_call.1} parent=1 // pred_check
      _
    $region11: #{tpu_custom_call.1} parent=1 // pred_check_branch
      %21 = sbr.rel (0) target = $region13
    $region12: #{tpu_custom_call.1} parent=1 // pred_region
      _
    $region13: #{tpu_custom_call.1} parent=1 // pred_fallthru
      _
    // Predicated region
    $region14: #{tpu_custom_call.1} parent=1 // pred_check
      _
    $region15: #{tpu_custom_call.1} parent=1 // pred_check_branch
      %23 = sbr.rel (0) target = $region17
    $region16: #{tpu_custom_call.1} parent=1 // pred_region
      _
    $region17: #{tpu_custom_call.1} parent=1 // pred_fallthru
      _
    // Predicated region
    $region18: #{tpu_custom_call.1} parent=1 // pred_check
      _
    $region19: #{tpu_custom_call.1} parent=1 // pred_check_branch
      %25 = sbr.rel (0) target = $region21
    $region20: #{tpu_custom_call.1} parent=1 // pred_region
      _
    $region21: #{tpu_custom_call.1} parent=1 // pred_fallthru
      _
    // Predicated region
    $region22: #{tpu_custom_call.1} parent=1 // pred_check
      _
    $region23: #{tpu_custom_call.1} parent=1 // pred_check_branch
      %27 = sbr.rel (0) target = $region25
    $region24: #{tpu_custom_call.1} parent=1 // pred_region
      _
    $region25: #{tpu_custom_call.1} parent=1 // pred_fallthru
      _
    // Predicated region
    $region26: #{tpu_custom_call.1} parent=1 // pred_check
      _
    $region27: #{tpu_custom_call.1} parent=1 // pred_check_branch
      %29 = sbr.rel (0) target = $region29
    $region28: #{tpu_custom_call.1} parent=1 // pred_region
      _
    $region29: #{tpu_custom_call.1} parent=1 // pred_fallthru
      _
    // Predicated region
    $region30: #{tpu_custom_call.1} parent=1 // pred_check
      _
    $region31: #{tpu_custom_call.1} parent=1 // pred_check_branch
      %31 = sbr.rel (0) target = $region33
    $region32: #{tpu_custom_call.1} parent=1 // pred_region
      _
    $region33: #{tpu_custom_call.1} parent=1 // pred_fallthru
      _
    // Predicated region
    $region34: #{tpu_custom_call.1} parent=1 // pred_check
      _
    $region35: #{tpu_custom_call.1} parent=1 // pred_check_branch
      %33 = sbr.rel (0) target = $region37
    $region36: #{tpu_custom_call.1} parent=1 // pred_region
      _
    $region37: #{tpu_custom_call.1} parent=1 // pred_fallthru
      _
    // Predicated region
    $region38: #{tpu_custom_call.1} parent=1 // pred_check
      _
    $region39: #{tpu_custom_call.1} parent=1 // pred_check_branch
      %35 = sbr.rel (0) target = $region41
    $region40: #{tpu_custom_call.1} parent=1 // pred_region
      _
    $region41: #{tpu_custom_call.1} parent=1 // pred_fallthru
      _
    %v37 = vld [vmem:[%s0] sm:$0xff]
    %v38 = vld [vmem:[%s1] sm:$0xf]
    %v39 = vld [vmem:[%s1 + $0x4] sm:$0xf]
    %v40 = vld [vmem:[%s1 + $0x8] sm:$0xf]
    %v41 = vld [vmem:[%s1 + $0xc] sm:$0xf]
    %v42 = vld [vmem:[%s1 + $0x10] sm:$0xf]
    %v43 = vld [vmem:[%s1 + $0x14] sm:$0xf]
    %v44 = vld [vmem:[%s1 + $0x18] sm:$0xf]
    %v45 = vld [vmem:[%s1 + $0x1c] sm:$0xf]
    %v46 = vld [vmem:[%s1 + $0x20] sm:$0xf]
    %v47 = vld [vmem:[%s1 + $0x24] sm:$0xf]
    %v48 = vld [vmem:[%s1 + $0x28] sm:$0xf]
    %v49 = vld [vmem:[%s1 + $0x2c] sm:$0xf]
    %v50 = vld [vmem:[%s1 + $0x30] sm:$0xf]
    %v51 = vld [vmem:[%s1 + $0x34] sm:$0xf]
    %v52 = vld [vmem:[%s1 + $0x38] sm:$0xf]
    %v53 = vld [vmem:[%s1 + $0x3c] sm:$0xf]
    %v54 = vld [vmem:[%s1 + $0x40] sm:$0xf]
    %v55 = vld [vmem:[%s1 + $0x44] sm:$0xf]
    %v56 = vld [vmem:[%s1 + $0x48] sm:$0xf]
    %v57 = vld [vmem:[%s1 + $0x4c] sm:$0xf]
    %v58 = vld [vmem:[%s1 + $0x50] sm:$0xf]
    %v59 = vld [vmem:[%s1 + $0x54] sm:$0xf]
    %v60 = vld [vmem:[%s1 + $0x58] sm:$0xf]
    %v61 = vld [vmem:[%s1 + $0x5c] sm:$0xf]
    %v62 = vld [vmem:[%s2] sm:$0x1]
    %v64 = vlaneseq
    %v65 = vshrl.u32 %v64, 7
    %v66 = vsub.s32 0, %v65
    %v67 = vrot.slane %v62, %v66
    %v70 = vunpack.c.l.b16 %v37
    %v71 = vunpack.c.h.b16 %v37
    %v72 = vpack.c.b16 %v70, %v70
    %v73 = vpack.c.b16 %v71, %v71
    %v99 = vunpack.c.l.b16 %v38
    %v100 = vunpack.c.l.b16 %v39
    %v101 = vunpack.c.l.b16 %v40
    %v102 = vunpack.c.l.b16 %v41
    %v103 = vunpack.c.l.b16 %v42
    %v104 = vunpack.c.l.b16 %v43
    %v105 = vunpack.c.l.b16 %v44
    %v106 = vunpack.c.l.b16 %v45
    %v107 = vunpack.c.l.b16 %v46
    %v108 = vunpack.c.l.b16 %v47
    %v109 = vunpack.c.l.b16 %v48
    %v110 = vunpack.c.l.b16 %v49
    %v111 = vunpack.c.l.b16 %v50
    %v112 = vunpack.c.l.b16 %v51
    %v113 = vunpack.c.l.b16 %v52
    %v114 = vunpack.c.l.b16 %v53
    %v115 = vunpack.c.l.b16 %v54
    %v116 = vunpack.c.l.b16 %v55
    %v117 = vunpack.c.l.b16 %v56
    %v118 = vunpack.c.l.b16 %v57
    %v119 = vunpack.c.l.b16 %v58
    %v120 = vunpack.c.l.b16 %v59
    %v121 = vunpack.c.l.b16 %v60
    %v122 = vunpack.c.l.b16 %v61
    %v123 = vpack.c.b16 %v100, %v99
    %v124 = vpack.c.b16 %v102, %v101
    %v125 = vpack.c.b16 %v104, %v103
    %v126 = vpack.c.b16 %v106, %v105
    %v127 = vpack.c.b16 %v108, %v107
    %v128 = vpack.c.b16 %v110, %v109
    %v129 = vpack.c.b16 %v112, %v111
    %v130 = vpack.c.b16 %v114, %v113
    %v131 = vpack.c.b16 %v116, %v115
    %v132 = vpack.c.b16 %v118, %v117
    %v133 = vpack.c.b16 %v120, %v119
    %v134 = vpack.c.b16 %v122, %v121
    %vm147 = vcmask 523264
    %v149 = vsel %vm147, %v73, 0
    %151 = vmatprep.subr.bf16.mxu0 0
    %152 = vmatpush1.bf16.msra.mxu0 %v130
    %153 = vmatprep.subr.bf16.mxu0 0
    %154 = vmatpush1.bf16.msra.mxu0 %v129
    %155 = vmatprep.subr.bf16.mxu0 0
    %156 = vmatpush1.bf16.msra.mxu0 %v128
    %157 = vmatprep.subr.bf16.mxu0 0
    %158 = vmatpush1.bf16.msra.mxu0 %v127
    %159 = vmatprep.subr.bf16.mxu0 0
    %160 = vmatpush1.bf16.msra.mxu0 %v126
    %161 = vmatprep.subr.bf16.mxu0 0
    %162 = vmatpush1.bf16.msra.mxu0 %v125
    %163 = vmatprep.subr.bf16.mxu0 0
    %164 = vmatpush1.bf16.msra.mxu0 %v124
    %165 = vmatprep.subr.bf16.mxu0 0
    %166 = vmatpush1.bf16.msra.mxu0 %v123
    %167 = vmatprep.subr.bf16.mxu0 0
    %168 = vmatpush2.bf16.msra.mxu0 0
    %169 = vmatprep.subr.bf16.mxu0 0
    %170 = vmatpush2.bf16.msra.mxu0 0
    %171 = vmatprep.subr.bf16.mxu0 0
    %172 = vmatpush2.bf16.msra.mxu0 0
    %173 = vmatprep.subr.bf16.mxu0 0
    %174 = vmatpush2.bf16.msra.mxu0 0
    %175 = vmatprep.subr.bf16.mxu0 0
    %176 = vmatpush2.bf16.msra.mxu0 %v134
    %177 = vmatprep.subr.bf16.mxu0 0
    %178 = vmatpush2.bf16.msra.mxu0 %v133
    %179 = vmatprep.subr.bf16.mxu0 0
    %180 = vmatpush2.bf16.msra.mxu0 %v132
    %181 = vmatprep.subr.bf16.mxu0 0
    %182 = vmatpush2.bf16.msra.mxu0 %v131
    %183 = vmatprep.mubr.bf16.mxu0 %v149
    %184 = vmatmul.mubr.bf16.gmra.mxu0 %v72
    %v185 = vpop.f32.mrf.mxu0
    %v186 = vadd.f32 %v67, %v185
    %v187 = vpop.f32.mrf.mxu0
    %v188 = vpop.f32.mrf.mxu0
    %v189 = vpop.f32.mrf.mxu0
    %190 = vdwg.mxu0
    %v191 = vmax.f32 %v186, 0.0
    %v192 = vpack.c.bf16 %v191, %v191
    %v193 = vld [vmem:[%s3] sm:$0xf]
    %v194 = vld [vmem:[%s3 + $0x4] sm:$0xf]
    %v195 = vld [vmem:[%s3 + $0x8] sm:$0xf]
    %v196 = vld [vmem:[%s3 + $0xc] sm:$0xf]
    %v197 = vld [vmem:[%s3 + $0x10] sm:$0xf]
    %v198 = vld [vmem:[%s3 + $0x14] sm:$0xf]
    %v199 = vld [vmem:[%s4] sm:$0x1]
    %v201 = vlaneseq
    %v202 = vshrl.u32 %v201, 7
    %v203 = vsub.s32 0, %v202
    %v204 = vrot.slane %v199, %v203
    %v212 = vunpack.c.l.b16 %v193
    %v213 = vunpack.c.l.b16 %v194
    %v214 = vunpack.c.l.b16 %v195
    %v215 = vunpack.c.l.b16 %v196
    %v216 = vunpack.c.l.b16 %v197
    %v217 = vunpack.c.l.b16 %v198
    %v218 = vpack.c.b16 %v213, %v212
    %v219 = vpack.c.b16 %v215, %v214
    %v220 = vpack.c.b16 %v217, %v216
    %vm224 = vcmask 392192
    %v226 = vsel %vm224, %v192, 0
    %228 = vmatprep.subr.bf16.mxu0 0
    %229 = vmatpush1.bf16.msra.mxu0 0
    %230 = vmatprep.subr.bf16.mxu0 0
    %231 = vmatpush1.bf16.msra.mxu0 0
    %232 = vmatprep.subr.bf16.mxu0 0
    %233 = vmatpush1.bf16.msra.mxu0 0
    %234 = vmatprep.subr.bf16.mxu0 0
    %235 = vmatpush1.bf16.msra.mxu0 0
    %236 = vmatprep.subr.bf16.mxu0 0
    %237 = vmatpush1.bf16.msra.mxu0 0
    %238 = vmatprep.subr.bf16.mxu0 0
    %239 = vmatpush1.bf16.msra.mxu0 %v220
    %240 = vmatprep.subr.bf16.mxu0 0
    %241 = vmatpush1.bf16.msra.mxu0 %v219
    %242 = vmatprep.subr.bf16.mxu0 0
    %243 = vmatpush1.bf16.msra.mxu0 %v218
    %244 = vmatprep.subr.bf16.mxu0 0
    %245 = vmatpush2.bf16.msra.mxu0 0
    %246 = vmatprep.subr.bf16.mxu0 0
    %247 = vmatpush2.bf16.msra.mxu0 0
    %248 = vmatprep.subr.bf16.mxu0 0
    %249 = vmatpush2.bf16.msra.mxu0 0
    %250 = vmatprep.subr.bf16.mxu0 0
    %251 = vmatpush2.bf16.msra.mxu0 0
    %252 = vmatprep.subr.bf16.mxu0 0
    %253 = vmatpush2.bf16.msra.mxu0 0
    %254 = vmatprep.subr.bf16.mxu0 0
    %255 = vmatpush2.bf16.msra.mxu0 0
    %256 = vmatprep.subr.bf16.mxu0 0
    %257 = vmatpush2.bf16.msra.mxu0 0
    %258 = vmatprep.subr.bf16.mxu0 0
    %259 = vmatpush2.bf16.msra.mxu0 0
    %260 = vmatprep.mubr.bf16.mxu0 0
    %261 = vmatmul.mubr.bf16.gmra.mxu0 %v226
    %v262 = vpop.f32.mrf.mxu0
    %v263 = vadd.f32 %v204, %v262
    %v264 = vpop.f32.mrf.mxu0
    %v265 = vpop.f32.mrf.mxu0
    %v266 = vpop.f32.mrf.mxu0
    %267 = vdwg.mxu0
    %v268 = vmax.f32 %v263, 0.0
    %v269 = vpack.c.bf16 %v268, %v268
    %v270 = vld [vmem:[%s5] sm:$0xf]
    %v271 = vld [vmem:[%s5 + $0x4] sm:$0xf]
    %v272 = vld [vmem:[%s5 + $0x8] sm:$0xf]
    %v273 = vld [vmem:[%s6] sm:$0x1]
    %v275 = vlaneseq
    %v276 = vshrl.u32 %v275, 7
    %v277 = vsub.s32 0, %v276
    %v278 = vrot.slane %v273, %v277
    %v283 = vunpack.c.l.b16 %v270
    %v284 = vunpack.c.l.b16 %v271
    %v285 = vunpack.c.l.b16 %v272
    %v286 = vpack.c.b16 %v284, %v283
    %v287 = vpack.c.b16 %v285, %v285
    %vm289 = vcmask 195584
    %v291 = vsel %vm289, %v269, 0
    %vm293 = vcmask 1043456
    %v295 = vsel %vm293, %v287, 0
    %297 = vmatprep.subr.bf16.mxu0 0
    %298 = vmatpush1.bf16.msra.mxu0 0
    %299 = vmatprep.subr.bf16.mxu0 0
    %300 = vmatpush1.bf16.msra.mxu0 0
    %301 = vmatprep.subr.bf16.mxu0 0
    %302 = vmatpush1.bf16.msra.mxu0 0
    %303 = vmatprep.subr.bf16.mxu0 0
    %304 = vmatpush1.bf16.msra.mxu0 0
    %305 = vmatprep.subr.bf16.mxu0 0
    %306 = vmatpush1.bf16.msra.mxu0 0
    %307 = vmatprep.subr.bf16.mxu0 0
    %308 = vmatpush1.bf16.msra.mxu0 0
    %309 = vmatprep.subr.bf16.mxu0 0
    %310 = vmatpush1.bf16.msra.mxu0 %v295
    %311 = vmatprep.subr.bf16.mxu0 0
    %312 = vmatpush1.bf16.msra.mxu0 %v286
    %313 = vmatprep.subr.bf16.mxu0 0
    %314 = vmatpush2.bf16.msra.mxu0 0
    %315 = vmatprep.subr.bf16.mxu0 0
    %316 = vmatpush2.bf16.msra.mxu0 0
    %317 = vmatprep.subr.bf16.mxu0 0
    %318 = vmatpush2.bf16.msra.mxu0 0
    %319 = vmatprep.subr.bf16.mxu0 0
    %320 = vmatpush2.bf16.msra.mxu0 0
    %321 = vmatprep.subr.bf16.mxu0 0
    %322 = vmatpush2.bf16.msra.mxu0 0
    %323 = vmatprep.subr.bf16.mxu0 0
    %324 = vmatpush2.bf16.msra.mxu0 0
    %325 = vmatprep.subr.bf16.mxu0 0
    %326 = vmatpush2.bf16.msra.mxu0 0
    %327 = vmatprep.subr.bf16.mxu0 0
    %328 = vmatpush2.bf16.msra.mxu0 0
    %329 = vmatprep.mubr.bf16.mxu0 0
    %330 = vmatmul.mubr.bf16.gmra.mxu0 %v291
    %v331 = vpop.f32.mrf.mxu0
    %v332 = vadd.f32 %v278, %v331
    %v333 = vpop.f32.mrf.mxu0
    %v334 = vpop.f32.mrf.mxu0
    %v335 = vpop.f32.mrf.mxu0
    %336 = vdwg.mxu0
    %vm337 = vcmask 23552
    %v338 = vsel %vm337, %v332, -inf
    %339 = vmax.xlane.f32.xlu0 %v338
    %v340 = vpop.xlane.xlu0 %339
    %v341 = vsub.f32 %v332, %v340
    %v342 = vmul.f32 %v341, 1.442695
    %v343 = vpow.pop %v342
    %v344 = vsel %vm337, %v343, 0.0
    %345 = vadd.xlane.f32.xlu0 %v344
    %v346 = vpop.xlane.xlu0 %345
    %v347 = vrcp.pop %v346
    %v348 = vmul.f32 %v343, %v347
    %v349 = vpack.c.bf16 %v348, %v348
    %v350 = vld [vmem:[%s7] sm:$0xf]
    %352 = vset.pattern.permute.xlu0 0
    %353 = vperm.xlu0 %352, %v349
    %v354 = vpop.permute.xlu0 %353
    %v356 = vmul.bf16 %v350, %v354
    %v357 = vunpack.c.l.bf16 %v356
    %v358 = vld [vmem:[%s8] sm:$0xf]
    %359 = vset.pattern.permute.xlu0 1
    %360 = vperm.xlu0 %359, %v349
    %v361 = vpop.permute.xlu0 %360
    %v363 = vmul.bf16 %v358, %v361
    %v364 = vunpack.c.l.bf16 %v363
    %v365 = vadd.f32 %v357, %v364
    %v366 = vld [vmem:[%s9] sm:$0xf]
    %367 = vset.pattern.permute.xlu0 2
    %368 = vperm.xlu0 %367, %v349
    %v369 = vpop.permute.xlu0 %368
    %v371 = vmul.bf16 %v366, %v369
    %v372 = vunpack.c.l.bf16 %v371
    %v373 = vadd.f32 %v365, %v372
    %v374 = vpack.c.bf16 %v373, %v373
    %vm375 = vcmask 125952
    %376 = vst.msk [vmem:[#allocation2] sm:$0xf] %vm375, %v374
    // Predicated region
    $region42: #{tpu_custom_call.1} parent=1 // pred_check
      _
    $region43: #{tpu_custom_call.1} parent=1 // pred_check_branch
      %378 = sbr.rel (0) target = $region45
    $region44: #{tpu_custom_call.1} parent=1 // pred_region
      %s380 = ssub.s32 64, 64
      %381 = vsyncadd [#allocation3], %s380
      %s383 = sshll.u32 [#allocation2], 4
      %s384 = int_to_ptr.vmem [resolvable:$true] %s383
      %386 = dma.vmem_to_hbm [thread:$0]  %s384, 64, %s10, [#allocation3]
    $region45: #{tpu_custom_call.1} parent=1 // pred_fallthru
      _
    // Predicated region
    $region46: #{tpu_custom_call.1} parent=1 // pred_check
      _
    $region47: #{tpu_custom_call.1} parent=1 // pred_check_branch
      %388 = sbr.rel (0) target = $region49
    $region48: #{tpu_custom_call.1} parent=1 // pred_region
      %389 = dma.done [#allocation3], 64
    $region49: #{tpu_custom_call.1} parent=1 // pred_fallthru
      _
    %390 = vsyncpa [#allocation3], 1

</llo_original>
